<compile_context>
chip_gen: v6e
topology: v6e:2x2x1
jax: 0.10.0
libtpu: 0.0.40
codegen_flags: <defaults>
</compile_context>

<pallas_src>
import functools

import jax
import jax.numpy as jnp
from jax import lax
from jax.experimental import pallas as pl
from jax.experimental.pallas import tpu as pltpu


# ==========================================================================
# Pallas kernel: fused QM head
#   stage-4 activations -> global avg pool -> [mu|logvar] matmul ->
#   reparameterise -> KL reduction (SMEM scalar)
# ==========================================================================

def _qm_head_kernel(x_ref, w_ref, b_ref, eps_ref, m_ref, kl_ref, *, dpad):
    """x_ref:   (B, S, 512)   bf16  stage-4 activations, S = H4*W4
       w_ref:   (512, 2*dpad) bf16  fused weight, cols [0:dpad]=mu, [dpad:]=logvar
       b_ref:   (1, 2*dpad)   f32   fused bias (2-D, lane-aligned)
       eps_ref: (B, dpad)     f32   std-normal sample (values past dim_m unused)
       m_ref:   (B, dpad)     f32   latent sample, lane-dense (caller slices dim_m)
       kl_ref:  (1, 1)        f32   scalar KL (SMEM)
    """
    # Global average pool in f32 (v5e has no bf16 VPU), then bf16 MXU matmul
    # with f32 accumulation.
    feat = jnp.mean(x_ref[...].astype(jnp.float32), axis=1)            # (B, 512)
    y = jnp.dot(feat.astype(jnp.bfloat16), w_ref[...],
                preferred_element_type=jnp.float32)
    y = y + b_ref[...]                                                  # (B, 2*dpad)

    mu = y[:, :dpad]            # split at lane 128 -> (8,128)-tile aligned
    logvar = y[:, dpad:]
    sigma = jnp.exp(0.5 * logvar)                                       # f32 EUP

    # Lane-dense (B, 128) store: unmasked vst (no vst.msk).
    m_ref[...] = mu + sigma * eps_ref[...]

    # Padded lanes: mu=0, logvar=0 -> sigma=1 -> contribution exactly 0.
    kl = jnp.sum(0.5 * sigma * sigma + 0.5 * mu * mu - 0.5 * logvar - 0.5)
    kl_ref[0, 0] = kl


def qm_head_pallas(params, feats4, eps):
    """Fused head: one grid-less pallas_call on the stage-4 activations.

    feats4: (B, H4, W4, 512) f32  last-stage ResNet activations
    eps:    (B, dpad)        f32  pre-padded std-normal draw
    returns (m_pad (B, dpad) f32, kl scalar f32)
    """
    b, h4, w4, c = feats4.shape
    dpad = params['w_head'].shape[1] // 2
    x = feats4.reshape(b, h4 * w4, c).astype(jnp.bfloat16)   # bf16 into the kernel

    m_pad, kl = pl.pallas_call(
        functools.partial(_qm_head_kernel, dpad=dpad),
        out_shape=(jax.ShapeDtypeStruct((b, dpad), jnp.float32),
                   jax.ShapeDtypeStruct((1, 1), jnp.float32)),
        in_specs=[pl.BlockSpec(memory_space=pltpu.MemorySpace.VMEM)] * 4,
        out_specs=(pl.BlockSpec(memory_space=pltpu.MemorySpace.VMEM),
                   pl.BlockSpec(memory_space=pltpu.MemorySpace.SMEM)),
    )(x, params['w_head'], params['b_head'], eps)
    return m_pad, kl[0, 0]


# ==========================================================================
# ResNet-18 feature extractor (plain XLA, NHWC, bf16 weights / f32 accumulate)
# ==========================================================================

def _conv(x, w, stride, pad):
    return lax.conv_general_dilated(
        x.astype(jnp.bfloat16), w, (stride, stride), ((pad, pad), (pad, pad)),
        dimension_numbers=('NHWC', 'HWIO', 'NHWC'),
        preferred_element_type=jnp.float32)


def _conv_bn(x, p, stride, relu):
    k = p['w'].shape[0]
    y = _conv(x, p['w'], stride, (k - 1) // 2)
    y = y * p['scale'][None, None, None, :] + p['shift'][None, None, None, :]
    return jnp.maximum(y, 0.0) if relu else y


def _basic_block(x, p, stride):
    out = _conv_bn(x, p['conv1'], stride, relu=True)
    out = _conv_bn(out, p['conv2'], 1, relu=False)
    sc = _conv_bn(x, p['down'], stride, relu=False) if 'down' in p else x
    return jnp.maximum(out + sc, 0.0)


def resnet18_features(x_nchw, params):
    """ResNet-18 trunk -> (B, H4, W4, 512) stage-4 activations (pool is fused
    into the Pallas head kernel)."""
    x = jnp.transpose(x_nchw, (0, 2, 3, 1))                     # NCHW -> NHWC once
    x = _conv_bn(x, params['stem'], 2, relu=True)               # 7x7 /2
    x = lax.reduce_window(x, -jnp.inf, lax.max, (1, 3, 3, 1), (1, 2, 2, 1),
                          ((0, 0), (1, 1), (1, 1), (0, 0)))     # 3x3 maxpool /2
    for stage, s in zip(params['stages'], (1, 2, 2, 2)):
        for i, blk in enumerate(stage):
            x = _basic_block(x, blk, s if i == 0 else 1)
    return x                                                    # (B, H4, W4, 512)


# ==========================================================================
# Parameter init
# ==========================================================================

def _conv_bn_init(key, kh, kw, cin, cout, residual_last=False):
    k1, k2, k3 = jax.random.split(key, 3)
    w = (jax.random.normal(k1, (kh, kw, cin, cout), jnp.float32)
         * jnp.sqrt(2.0 / (kh * kw * cin))).astype(jnp.bfloat16)
    if residual_last:        # small-init (near-zero) last BN gamma of each block
        scale = 0.1 * jax.random.normal(k2, (cout,), jnp.float32)
    else:
        scale = 1.0 + 0.1 * jax.random.normal(k2, (cout,), jnp.float32)
    shift = 0.05 * jax.random.normal(k3, (cout,), jnp.float32)
    return dict(w=w, scale=scale, shift=shift)


def init_params(key, *, num_channels, dim_m):
    # Pad dim_m up to a full 128-lane tile so the fused head is lane-dense and
    # the mu/logvar split is tile-aligned (N = 2*dpad = 256 matches the
    # 256-wide MXU on v6e/v7x).
    dpad = max(128, ((dim_m + 127) // 128) * 128)
    kit = iter(jax.random.split(key, 32))

    stem = _conv_bn_init(next(kit), 7, 7, num_channels, 64)

    stages, cin = [], 64
    for cout in (64, 128, 256, 512):
        blocks = []
        for i in range(2):
            blk = dict(
                conv1=_conv_bn_init(next(kit), 3, 3, cin if i == 0 else cout, cout),
                conv2=_conv_bn_init(next(kit), 3, 3, cout, cout, residual_last=True))
            if i == 0 and cin != cout:
                blk['down'] = _conv_bn_init(next(kit), 1, 1, cin, cout)
            blocks.append(blk)
        stages.append(blocks)
        cin = cout

    kmu, kbm, klv, kbl = jax.random.split(next(kit), 4)
    wmu = jax.random.normal(kmu, (512, dim_m), jnp.float32) / jnp.sqrt(512.0)
    wlv = jax.random.normal(klv, (512, dim_m), jnp.float32) / jnp.sqrt(512.0)
    bmu = 0.01 * jax.random.normal(kbm, (dim_m,), jnp.float32)
    blv = 0.01 * jax.random.normal(kbl, (dim_m,), jnp.float32)

    # Fuse linear_mu / linear_logvar into one lane-dense, zero-padded weight.
    # Pad columns are exactly 0 => mu=0, logvar=0 => sigma=1 => 0 KL contribution.
    w_head = jnp.zeros((512, 2 * dpad), jnp.float32)
    w_head = w_head.at[:, :dim_m].set(wmu).at[:, dpad:dpad + dim_m].set(wlv)
    b_head = jnp.zeros((1, 2 * dpad), jnp.float32)
    b_head = b_head.at[0, :dim_m].set(bmu).at[0, dpad:dpad + dim_m].set(blv)

    return dict(stem=stem, stages=stages,
                w_head=w_head.astype(jnp.bfloat16), b_head=b_head)


# ==========================================================================
# Forward + plain-jnp reference for the Pallas head
# ==========================================================================

def qmresnet_forward(params, x, eps, dim_m):
    feats4 = resnet18_features(x, params)          # (B, H4, W4, 512)
    m_pad, kl = qm_head_pallas(params, feats4, eps)
    return m_pad[:, :dim_m], kl                    # (B, dim_m), scalar KL


def reference_head(params, feats4, eps, dim_m):
    """Reference head mirroring the kernel's rounding points (bf16 activations,
    f32 pool, bf16 MXU operands, f32 accumulate / elementwise)."""
    dpad = params['w_head'].shape[1] // 2
    b = feats4.shape[0]
    xa = feats4.reshape(b, -1, 512).astype(jnp.bfloat16).astype(jnp.float32)
    feat = jnp.mean(xa, axis=1)
    feat = feat.astype(jnp.bfloat16).astype(jnp.float32)
    w = params['w_head'].astype(jnp.float32)
    bias = params['b_head']
    mu = feat @ w[:, :dim_m] + bias[0, :dim_m]
    logvar = feat @ w[:, dpad:dpad + dim_m] + bias[0, dpad:dpad + dim_m]
    sigma = jnp.exp(0.5 * logvar)
    m = mu + sigma * eps[:, :dim_m]
    kl = jnp.sum(sigma ** 2 / 2 + mu ** 2 / 2 - jnp.log(sigma) - 0.5)
    return m, kl


if __name__ == "__main__":
    key = jax.random.PRNGKey(0)
    k_param, k_x, k_eps = jax.random.split(key, 3)

    dim_m = 32
    batch = 2
    num_channels = 3
    spatial = 32

    params = init_params(k_param, num_channels=num_channels, dim_m=dim_m)
    dpad = params['w_head'].shape[1] // 2

    x = jax.random.normal(k_x, (batch, num_channels, spatial, spatial), jnp.float32)
    # Deterministic stand-in for torch's std_normal.sample(mu.shape), generated
    # already lane-padded to dpad so no per-call pad/scatter feeds the kernel.
    eps = jax.random.normal(k_eps, (batch, dpad), jnp.float32)

    m, kl = qmresnet_forward(params, x, eps, dim_m)
    jax.block_until_ready((m, kl))

    feats4 = resnet18_features(x, params)
    m_ref, kl_ref = reference_head(params, feats4, eps, dim_m)

    assert m.shape == (batch, dim_m)
    assert jnp.allclose(m, m_ref, atol=1e-3, rtol=1e-3)
    assert jnp.allclose(kl, kl_ref, atol=1e-2, rtol=1e-3)

    print("KERNEL_OK")
</pallas_src>

<mosaic_0001>
module attributes {stable_mosaic.version = 11 : i64} {
  func.func @_qm_head_kernel(%arg0: memref<2x1x512xbf16, #tpu.memory_space<vmem>>, %arg1: memref<512x256xbf16, #tpu.memory_space<vmem>>, %arg2: memref<1x256xf32, #tpu.memory_space<vmem>>, %arg3: memref<2x128xf32, #tpu.memory_space<vmem>>, %arg4: memref<2x128xf32, #tpu.memory_space<vmem>>, %arg5: memref<1x1xf32, #tpu.memory_space<smem>>) attributes {dimension_semantics = [], scalar_prefetch = 0 : i64, scratch_operands = 0 : i64, tpu.core_type = #tpu.core_type<tc>} {
    %c0 = arith.constant 0 : index
    %c0_0 = arith.constant 0 : index
    %c0_1 = arith.constant 0 : index
    %0 = vector.load %arg0[%c0, %c0_0, %c0_1] : memref<2x1x512xbf16, #tpu.memory_space<vmem>>, vector<2x1x512xbf16>
    %1 = arith.extf %0 : vector<2x1x512xbf16> to vector<2x1x512xf32>
    %cst = arith.constant dense<0.000000e+00> : vector<2x512xf32>
    %2 = vector.multi_reduction <add>, %1, %cst [1] : vector<2x1x512xf32> to vector<2x512xf32>
    %cst_2 = arith.constant 1.000000e+00 : f32
    %3 = vector.broadcast %cst_2 : f32 to vector<2x512xf32>
    %4 = arith.divf %2, %3 : vector<2x512xf32>
    %5 = arith.truncf %4 : vector<2x512xf32> to vector<2x512xbf16>
    %c0_3 = arith.constant 0 : index
    %c0_4 = arith.constant 0 : index
    %6 = vector.load %arg1[%c0_3, %c0_4] : memref<512x256xbf16, #tpu.memory_space<vmem>>, vector<512x256xbf16>
    %cst_5 = arith.constant dense<0.000000e+00> : vector<2x256xf32>
    %7 = tpu.matmul %5, %6, %cst_5 {dimension_numbers = #tpu.dot_dimension_numbers<[1], [0], [0], [1], [0, 0, 1, 1], [], []>} : vector<2x512xbf16>, vector<512x256xbf16>, vector<2x256xf32> -> vector<2x256xf32>
    %c0_6 = arith.constant 0 : index
    %c0_7 = arith.constant 0 : index
    %8 = vector.load %arg2[%c0_6, %c0_7] : memref<1x256xf32, #tpu.memory_space<vmem>>, vector<1x256xf32>
    %9 = vector.broadcast %8 : vector<1x256xf32> to vector<2x256xf32>
    %10 = arith.addf %7, %9 : vector<2x256xf32>
    %11 = vector.extract_strided_slice %10 {offsets = [0, 0], sizes = [2, 128], strides = [1, 1]} : vector<2x256xf32> to vector<2x128xf32>
    %12 = vector.extract_strided_slice %10 {offsets = [0, 128], sizes = [2, 128], strides = [1, 1]} : vector<2x256xf32> to vector<2x128xf32>
    %cst_8 = arith.constant 5.000000e-01 : f32
    %13 = vector.broadcast %cst_8 : f32 to vector<2x128xf32>
    %14 = arith.mulf %13, %12 : vector<2x128xf32>
    %15 = math.exp %14 : vector<2x128xf32>
    %c0_9 = arith.constant 0 : index
    %c0_10 = arith.constant 0 : index
    %16 = vector.load %arg3[%c0_9, %c0_10] : memref<2x128xf32, #tpu.memory_space<vmem>>, vector<2x128xf32>
    %17 = arith.mulf %15, %16 : vector<2x128xf32>
    %18 = arith.addf %11, %17 : vector<2x128xf32>
    %c0_11 = arith.constant 0 : index
    %c0_12 = arith.constant 0 : index
    %19 = vector.load %arg4[%c0_11, %c0_12] : memref<2x128xf32, #tpu.memory_space<vmem>>, vector<2x128xf32>
    tpu.vector_store %arg4[%c0_11, %c0_12], %18 {strides = array<i32>} : memref<2x128xf32, #tpu.memory_space<vmem>>, vector<2x128xf32>,
    %cst_13 = arith.constant 5.000000e-01 : f32
    %20 = vector.broadcast %cst_13 : f32 to vector<2x128xf32>
    %21 = arith.mulf %20, %15 : vector<2x128xf32>
    %22 = arith.mulf %21, %15 : vector<2x128xf32>
    %cst_14 = arith.constant 5.000000e-01 : f32
    %23 = vector.broadcast %cst_14 : f32 to vector<2x128xf32>
    %24 = arith.mulf %23, %11 : vector<2x128xf32>
    %25 = arith.mulf %24, %11 : vector<2x128xf32>
    %26 = arith.addf %22, %25 : vector<2x128xf32>
    %cst_15 = arith.constant 5.000000e-01 : f32
    %27 = vector.broadcast %cst_15 : f32 to vector<2x128xf32>
    %28 = arith.mulf %27, %12 : vector<2x128xf32>
    %29 = arith.subf %26, %28 : vector<2x128xf32>
    %cst_16 = arith.constant 5.000000e-01 : f32
    %30 = vector.broadcast %cst_16 : f32 to vector<2x128xf32>
    %31 = arith.subf %29, %30 : vector<2x128xf32>
    %32 = vector.shape_cast %31 : vector<2x128xf32> to vector<1x2x128xf32>
    %cst_17 = arith.constant dense<0.000000e+00> : vector<1xf32>
    %33 = vector.multi_reduction <add>, %32, %cst_17 [1, 2] : vector<1x2x128xf32> to vector<1xf32>
    %34 = vector.shape_cast %33 : vector<1xf32> to vector<1x1x1xf32>
    %35 = vector.extract %34[0, 0, 0] : f32 from vector<1x1x1xf32>
    %c0_18 = arith.constant 0 : index
    %c0_19 = arith.constant 0 : index
    %36 = memref.load %arg5[%c0_18, %c0_19] : memref<1x1xf32, #tpu.memory_space<smem>>
    memref.store %35, %arg5[%c0_18, %c0_19] : memref<1x1xf32, #tpu.memory_space<smem>>
    return
  }
}

</mosaic_0001>

<llo_original>
// kernel: tpu_custom_call.1
$region0: #{tpu_custom_call.1}
  #allocation0 [shape = 'u32[]', space=smem, size = 0x4, offset = 0x4, fixed_abs, tag = 'smem constant byte address 0x4 - core index']
  #allocation1 [shape = 'u32[144,128]{1,0:T(1,128)}', space=vmem, size = 0x12000, scoped, tag = 'internal scratch']
  %s0 = inlined_call_operand.vmem [shape: bf16[2,1,512], index: 0, kind: input, shape index: {}]
  %s1 = inlined_call_operand.hbm [shape: bf16[512,256], index: 1, kind: input, shape index: {}]
  %s2 = inlined_call_operand.vmem [shape: f32[1,256], index: 2, kind: input, shape index: {}]
  %s3 = inlined_call_operand.vmem [shape: f32[2,128], index: 3, kind: input, shape index: {}]
  %s4 = inlined_call_operand.hbm [shape: f32[2,128], index: 4, kind: output, shape index: {0}]
  %s5 = inlined_call_operand.hbm [shape: f32[1,1], index: 5, kind: output, shape index: {1}]
  %6 = xla_tuple %s4, %s5
  %s7 = sld [smem:[#allocation0]]
  $region38: #{tpu_custom_call.1} parent=0
    _
  %s9 = ssub.s32 1, %s7
  %s10 = scalar_select 0, %s9, %s7
  $region1: #{tpu_custom_call.1} parent=0
    #allocation2 [shape = 'u8[262144]{0}', space=vmem, size = 0x40000, scoped, tag = 'input window, operand 1, single buffered']
    #allocation3 [shape = 's32[1]{0}', space=sflag, size = 0x4, scoped, tag = 'scoped memory for tpu_custom_call.1']
    #allocation4 [shape = 's32[1]{0}', space=sflag, size = 0x4, scoped, tag = 'scoped memory for tpu_custom_call.1']
    #allocation5 [shape = 's32[1]{0}', space=sflag, size = 0x4, scoped, tag = 'scoped memory for tpu_custom_call.1']
    #allocation6 [shape = 'u8[1024]{0}', space=vmem, size = 0x400, scoped, tag = 'output window, operand 0, single buffered']
    #allocation7 [shape = 'u8[512]{0}', space=smem, size = 0x200, scoped, tag = 'output window, operand 1, single buffered']
    %11 = vsyncpa [#allocation3], 0
    %12 = vsyncpa [#allocation4], 0
    %13 = vsyncpa [#allocation5], 0
    // Predicated region
    $region2: #{tpu_custom_call.1} parent=1 // pred_check
      _
    $region3: #{tpu_custom_call.1} parent=1 // pred_check_branch
      %15 = sbr.rel (0) target = $region5
    $region4: #{tpu_custom_call.1} parent=1 // pred_region
      _
    $region5: #{tpu_custom_call.1} parent=1 // pred_fallthru
      _
    // Predicated region
    $region6: #{tpu_custom_call.1} parent=1 // pred_check
      _
    $region7: #{tpu_custom_call.1} parent=1 // pred_check_branch
      %17 = sbr.rel (0) target = $region9
    $region8: #{tpu_custom_call.1} parent=1 // pred_region
      %s19 = ssub.s32 8192, 8192
      %20 = vsyncadd [#allocation3], %s19
      %s21 = sshll.u32 [#allocation2], 4
      %s22 = int_to_ptr.vmem [resolvable:$true] %s21
      %27 = dma.hbm_to_vmem [thread:$0]  %s1, 8192, %s22, [#allocation3], 128, 128, 8
    $region9: #{tpu_custom_call.1} parent=1 // pred_fallthru
      _
    // Predicated region
    $region10: #{tpu_custom_call.1} parent=1 // pred_check
      _
    $region11: #{tpu_custom_call.1} parent=1 // pred_check_branch
      %29 = sbr.rel (0) target = $region13
    $region12: #{tpu_custom_call.1} parent=1 // pred_region
      _
    $region13: #{tpu_custom_call.1} parent=1 // pred_fallthru
      _
    // Predicated region
    $region14: #{tpu_custom_call.1} parent=1 // pred_check
      _
    $region15: #{tpu_custom_call.1} parent=1 // pred_check_branch
      %31 = sbr.rel (0) target = $region17
    $region16: #{tpu_custom_call.1} parent=1 // pred_region
      _
    $region17: #{tpu_custom_call.1} parent=1 // pred_fallthru
      _
    // Predicated region
    $region18: #{tpu_custom_call.1} parent=1 // pred_check
      _
    $region19: #{tpu_custom_call.1} parent=1 // pred_check_branch
      %33 = sbr.rel (0) target = $region21
    $region20: #{tpu_custom_call.1} parent=1 // pred_region
      %34 = dma.done [#allocation3], 8192
    $region21: #{tpu_custom_call.1} parent=1 // pred_fallthru
      _
    %v35 = vld [vmem:[%s0] sm:$0xf]
    %v36 = vld [vmem:[%s0 + $0x4] sm:$0xf]
    %v37 = vunpack.c.l.bf16 %v35
    %v38 = vunpack.c.l.bf16 %v36
    %v39 = vadd.f32 %v37, 0.0
    %v40 = vadd.f32 %v38, 0.0
    %v43 = vlaneseq
    %v44 = vshrl.u32 %v43, 7
    %v45 = vsub.s32 0, %v44
    %v46 = vrot.slane %v39, %v45
    %v47 = vlaneseq
    %v48 = vshrl.u32 %v47, 7
    %v49 = vsub.s32 2, %v48
    %v50 = vrot.slane %v39, %v49
    %v51 = vlaneseq
    %v52 = vshrl.u32 %v51, 7
    %v53 = vsub.s32 4, %v52
    %v54 = vrot.slane %v39, %v53
    %v55 = vlaneseq
    %v56 = vshrl.u32 %v55, 7
    %v57 = vsub.s32 6, %v56
    %v58 = vrot.slane %v39, %v57
    %v59 = vlaneseq
    %v60 = vshrl.u32 %v59, 7
    %v61 = vsub.s32 0, %v60
    %v62 = vrot.slane %v40, %v61
    %v63 = vlaneseq
    %v64 = vshrl.u32 %v63, 7
    %v65 = vsub.s32 2, %v64
    %v66 = vrot.slane %v40, %v65
    %v67 = vlaneseq
    %v68 = vshrl.u32 %v67, 7
    %v69 = vsub.s32 4, %v68
    %v70 = vrot.slane %v40, %v69
    %v71 = vlaneseq
    %v72 = vshrl.u32 %v71, 7
    %v73 = vsub.s32 6, %v72
    %v74 = vrot.slane %v40, %v73
    %v83 = vpack.c.bf16 %v46, %v46
    %v84 = vpack.c.bf16 %v50, %v50
    %v85 = vpack.c.bf16 %v54, %v54
    %v86 = vpack.c.bf16 %v58, %v58
    %v87 = vpack.c.bf16 %v62, %v62
    %v88 = vpack.c.bf16 %v66, %v66
    %v89 = vpack.c.bf16 %v70, %v70
    %v90 = vpack.c.bf16 %v74, %v74
    %v91 = vld [vmem:[#allocation2] sm:$0xff]
    %v92 = vld [vmem:[#allocation2 + $0x8] sm:$0xff]
    %v93 = vld [vmem:[#allocation2 + $0x10] sm:$0xff]
    %v94 = vld [vmem:[#allocation2 + $0x18] sm:$0xff]
    %v95 = vld [vmem:[#allocation2 + $0x20] sm:$0xff]
    %v96 = vld [vmem:[#allocation2 + $0x28] sm:$0xff]
    %v97 = vld [vmem:[#allocation2 + $0x30] sm:$0xff]
    %v98 = vld [vmem:[#allocation2 + $0x38] sm:$0xff]
    %v99 = vld [vmem:[#allocation2 + $0x40] sm:$0xff]
    %v100 = vld [vmem:[#allocation2 + $0x48] sm:$0xff]
    %v101 = vld [vmem:[#allocation2 + $0x50] sm:$0xff]
    %v102 = vld [vmem:[#allocation2 + $0x58] sm:$0xff]
    %v103 = vld [vmem:[#allocation2 + $0x60] sm:$0xff]
    %v104 = vld [vmem:[#allocation2 + $0x68] sm:$0xff]
    %v105 = vld [vmem:[#allocation2 + $0x70] sm:$0xff]
    %v106 = vld [vmem:[#allocation2 + $0x78] sm:$0xff]
    %v107 = vld [vmem:[#allocation2 + $0x80] sm:$0xff]
    %v108 = vld [vmem:[#allocation2 + $0x88] sm:$0xff]
    %v109 = vld [vmem:[#allocation2 + $0x90] sm:$0xff]
    %v110 = vld [vmem:[#allocation2 + $0x98] sm:$0xff]
    %v111 = vld [vmem:[#allocation2 + $0xa0] sm:$0xff]
    %v112 = vld [vmem:[#allocation2 + $0xa8] sm:$0xff]
    %v113 = vld [vmem:[#allocation2 + $0xb0] sm:$0xff]
    %v114 = vld [vmem:[#allocation2 + $0xb8] sm:$0xff]
    %v115 = vld [vmem:[#allocation2 + $0xc0] sm:$0xff]
    %v116 = vld [vmem:[#allocation2 + $0xc8] sm:$0xff]
    %v117 = vld [vmem:[#allocation2 + $0xd0] sm:$0xff]
    %v118 = vld [vmem:[#allocation2 + $0xd8] sm:$0xff]
    %v119 = vld [vmem:[#allocation2 + $0xe0] sm:$0xff]
    %v120 = vld [vmem:[#allocation2 + $0xe8] sm:$0xff]
    %v121 = vld [vmem:[#allocation2 + $0xf0] sm:$0xff]
    %v122 = vld [vmem:[#allocation2 + $0xf8] sm:$0xff]
    %v123 = vld [vmem:[#allocation2 + $0x100] sm:$0xff]
    %v124 = vld [vmem:[#allocation2 + $0x108] sm:$0xff]
    %v125 = vld [vmem:[#allocation2 + $0x110] sm:$0xff]
    %v126 = vld [vmem:[#allocation2 + $0x118] sm:$0xff]
    %v127 = vld [vmem:[#allocation2 + $0x120] sm:$0xff]
    %v128 = vld [vmem:[#allocation2 + $0x128] sm:$0xff]
    %v129 = vld [vmem:[#allocation2 + $0x130] sm:$0xff]
    %v130 = vld [vmem:[#allocation2 + $0x138] sm:$0xff]
    %v131 = vld [vmem:[#allocation2 + $0x140] sm:$0xff]
    %v132 = vld [vmem:[#allocation2 + $0x148] sm:$0xff]
    %v133 = vld [vmem:[#allocation2 + $0x150] sm:$0xff]
    %v134 = vld [vmem:[#allocation2 + $0x158] sm:$0xff]
    %v135 = vld [vmem:[#allocation2 + $0x160] sm:$0xff]
    %v136 = vld [vmem:[#allocation2 + $0x168] sm:$0xff]
    %v137 = vld [vmem:[#allocation2 + $0x170] sm:$0xff]
    %v138 = vld [vmem:[#allocation2 + $0x178] sm:$0xff]
    %v139 = vld [vmem:[#allocation2 + $0x180] sm:$0xff]
    %v140 = vld [vmem:[#allocation2 + $0x188] sm:$0xff]
    %v141 = vld [vmem:[#allocation2 + $0x190] sm:$0xff]
    %v142 = vld [vmem:[#allocation2 + $0x198] sm:$0xff]
    %v143 = vld [vmem:[#allocation2 + $0x1a0] sm:$0xff]
    %v144 = vld [vmem:[#allocation2 + $0x1a8] sm:$0xff]
    %v145 = vld [vmem:[#allocation2 + $0x1b0] sm:$0xff]
    %v146 = vld [vmem:[#allocation2 + $0x1b8] sm:$0xff]
    %v147 = vld [vmem:[#allocation2 + $0x1c0] sm:$0xff]
    %v148 = vld [vmem:[#allocation2 + $0x1c8] sm:$0xff]
    %v149 = vld [vmem:[#allocation2 + $0x1d0] sm:$0xff]
    %v150 = vld [vmem:[#allocation2 + $0x1d8] sm:$0xff]
    %v151 = vld [vmem:[#allocation2 + $0x1e0] sm:$0xff]
    %v152 = vld [vmem:[#allocation2 + $0x1e8] sm:$0xff]
    %v153 = vld [vmem:[#allocation2 + $0x1f0] sm:$0xff]
    %v154 = vld [vmem:[#allocation2 + $0x1f8] sm:$0xff]
    %v155 = vld [vmem:[%s2] sm:$0x3]
    %v157 = vlaneseq
    %v158 = vshrl.u32 %v157, 7
    %v159 = vsub.s32 0, %v158
    %v160 = vrot.slane %v155, %v159
    %v161 = vlaneseq
    %v162 = vshrl.u32 %v161, 7
    %v163 = vsub.s32 1, %v162
    %v164 = vrot.slane %v155, %v163
    %v175 = vunpack.c.l.b16 %v83
    %v176 = vunpack.c.l.b16 %v84
    %v177 = vunpack.c.l.b16 %v85
    %v178 = vunpack.c.l.b16 %v86
    %v179 = vunpack.c.l.b16 %v87
    %v180 = vunpack.c.l.b16 %v88
    %v181 = vunpack.c.l.b16 %v89
    %v182 = vunpack.c.l.b16 %v90
    %v183 = vrot.slane %v179, 7
    %vm184 = vcmask 1041409
    %v185 = vsel %vm184, %v183, %v175
    %v186 = vrot.slane %v180, 7
    %v187 = vsel %vm184, %v186, %v176
    %v188 = vrot.slane %v181, 7
    %v189 = vsel %vm184, %v188, %v177
    %v190 = vrot.slane %v182, 7
    %v191 = vsel %vm184, %v190, %v178
    %v192 = vpack.c.b16 %v185, %v185
    %v193 = vpack.c.b16 %v187, %v187
    %v194 = vpack.c.b16 %v189, %v189
    %v195 = vpack.c.b16 %v191, %v191
    %v264 = vunpack.c.l.b16 %v91
    %v265 = vunpack.c.h.b16 %v91
    %v266 = vunpack.c.l.b16 %v92
    %v267 = vunpack.c.h.b16 %v92
    %v268 = vunpack.c.l.b16 %v93
    %v269 = vunpack.c.h.b16 %v93
    %v270 = vunpack.c.l.b16 %v94
    %v271 = vunpack.c.h.b16 %v94
    %v272 = vunpack.c.l.b16 %v95
    %v273 = vunpack.c.h.b16 %v95
    %v274 = vunpack.c.l.b16 %v96
    %v275 = vunpack.c.h.b16 %v96
    %v276 = vunpack.c.l.b16 %v97
    %v277 = vunpack.c.h.b16 %v97
    %v278 = vunpack.c.l.b16 %v98
    %v279 = vunpack.c.h.b16 %v98
    %v280 = vunpack.c.l.b16 %v99
    %v281 = vunpack.c.h.b16 %v99
    %v282 = vunpack.c.l.b16 %v100
    %v283 = vunpack.c.h.b16 %v100
    %v284 = vunpack.c.l.b16 %v101
    %v285 = vunpack.c.h.b16 %v101
    %v286 = vunpack.c.l.b16 %v102
    %v287 = vunpack.c.h.b16 %v102
    %v288 = vunpack.c.l.b16 %v103
    %v289 = vunpack.c.h.b16 %v103
    %v290 = vunpack.c.l.b16 %v104
    %v291 = vunpack.c.h.b16 %v104
    %v292 = vunpack.c.l.b16 %v105
    %v293 = vunpack.c.h.b16 %v105
    %v294 = vunpack.c.l.b16 %v106
    %v295 = vunpack.c.h.b16 %v106
    %v296 = vunpack.c.l.b16 %v107
    %v297 = vunpack.c.h.b16 %v107
    %v298 = vunpack.c.l.b16 %v108
    %v299 = vunpack.c.h.b16 %v108
    %v300 = vunpack.c.l.b16 %v109
    %v301 = vunpack.c.h.b16 %v109
    %v302 = vunpack.c.l.b16 %v110
    %v303 = vunpack.c.h.b16 %v110
    %v304 = vunpack.c.l.b16 %v111
    %v305 = vunpack.c.h.b16 %v111
    %v306 = vunpack.c.l.b16 %v112
    %v307 = vunpack.c.h.b16 %v112
    %v308 = vunpack.c.l.b16 %v113
    %v309 = vunpack.c.h.b16 %v113
    %v310 = vunpack.c.l.b16 %v114
    %v311 = vunpack.c.h.b16 %v114
    %v312 = vunpack.c.l.b16 %v115
    %v313 = vunpack.c.h.b16 %v115
    %v314 = vunpack.c.l.b16 %v116
    %v315 = vunpack.c.h.b16 %v116
    %v316 = vunpack.c.l.b16 %v117
    %v317 = vunpack.c.h.b16 %v117
    %v318 = vunpack.c.l.b16 %v118
    %v319 = vunpack.c.h.b16 %v118
    %v320 = vunpack.c.l.b16 %v119
    %v321 = vunpack.c.h.b16 %v119
    %v322 = vunpack.c.l.b16 %v120
    %v323 = vunpack.c.h.b16 %v120
    %v324 = vunpack.c.l.b16 %v121
    %v325 = vunpack.c.h.b16 %v121
    %v326 = vunpack.c.l.b16 %v122
    %v327 = vunpack.c.h.b16 %v122
    %v328 = vunpack.c.l.b16 %v123
    %v329 = vunpack.c.h.b16 %v123
    %v330 = vunpack.c.l.b16 %v124
    %v331 = vunpack.c.h.b16 %v124
    %v332 = vunpack.c.l.b16 %v125
    %v333 = vunpack.c.h.b16 %v125
    %v334 = vunpack.c.l.b16 %v126
    %v335 = vunpack.c.h.b16 %v126
    %v336 = vunpack.c.l.b16 %v127
    %v337 = vunpack.c.h.b16 %v127
    %v338 = vunpack.c.l.b16 %v128
    %v339 = vunpack.c.h.b16 %v128
    %v340 = vunpack.c.l.b16 %v129
    %v341 = vunpack.c.h.b16 %v129
    %v342 = vunpack.c.l.b16 %v130
    %v343 = vunpack.c.h.b16 %v130
    %v344 = vunpack.c.l.b16 %v131
    %v345 = vunpack.c.h.b16 %v131
    %v346 = vunpack.c.l.b16 %v132
    %v347 = vunpack.c.h.b16 %v132
    %v348 = vunpack.c.l.b16 %v133
    %v349 = vunpack.c.h.b16 %v133
    %v350 = vunpack.c.l.b16 %v134
    %v351 = vunpack.c.h.b16 %v134
    %v352 = vunpack.c.l.b16 %v135
    %v353 = vunpack.c.h.b16 %v135
    %v354 = vunpack.c.l.b16 %v136
    %v355 = vunpack.c.h.b16 %v136
    %v356 = vunpack.c.l.b16 %v137
    %v357 = vunpack.c.h.b16 %v137
    %v358 = vunpack.c.l.b16 %v138
    %v359 = vunpack.c.h.b16 %v138
    %v360 = vunpack.c.l.b16 %v139
    %v361 = vunpack.c.h.b16 %v139
    %v362 = vunpack.c.l.b16 %v140
    %v363 = vunpack.c.h.b16 %v140
    %v364 = vunpack.c.l.b16 %v141
    %v365 = vunpack.c.h.b16 %v141
    %v366 = vunpack.c.l.b16 %v142
    %v367 = vunpack.c.h.b16 %v142
    %v368 = vunpack.c.l.b16 %v143
    %v369 = vunpack.c.h.b16 %v143
    %v370 = vunpack.c.l.b16 %v144
    %v371 = vunpack.c.h.b16 %v144
    %v372 = vunpack.c.l.b16 %v145
    %v373 = vunpack.c.h.b16 %v145
    %v374 = vunpack.c.l.b16 %v146
    %v375 = vunpack.c.h.b16 %v146
    %v376 = vunpack.c.l.b16 %v147
    %v377 = vunpack.c.h.b16 %v147
    %v378 = vunpack.c.l.b16 %v148
    %v379 = vunpack.c.h.b16 %v148
    %v380 = vunpack.c.l.b16 %v149
    %v381 = vunpack.c.h.b16 %v149
    %v382 = vunpack.c.l.b16 %v150
    %v383 = vunpack.c.h.b16 %v150
    %v384 = vunpack.c.l.b16 %v151
    %v385 = vunpack.c.h.b16 %v151
    %v386 = vunpack.c.l.b16 %v152
    %v387 = vunpack.c.h.b16 %v152
    %v388 = vunpack.c.l.b16 %v153
    %v389 = vunpack.c.h.b16 %v153
    %v390 = vunpack.c.l.b16 %v154
    %v391 = vunpack.c.h.b16 %v154
    %v392 = vpack.c.b16 %v266, %v264
    %v393 = vpack.c.b16 %v267, %v265
    %v394 = vpack.c.b16 %v270, %v268
    %v395 = vpack.c.b16 %v271, %v269
    %v396 = vpack.c.b16 %v274, %v272
    %v397 = vpack.c.b16 %v275, %v273
    %v398 = vpack.c.b16 %v278, %v276
    %v399 = vpack.c.b16 %v279, %v277
    %v400 = vpack.c.b16 %v282, %v280
    %v401 = vpack.c.b16 %v283, %v281
    %v402 = vpack.c.b16 %v286, %v284
    %v403 = vpack.c.b16 %v287, %v285
    %v404 = vpack.c.b16 %v290, %v288
    %v405 = vpack.c.b16 %v291, %v289
    %v406 = vpack.c.b16 %v294, %v292
    %v407 = vpack.c.b16 %v295, %v293
    %v408 = vpack.c.b16 %v298, %v296
    %v409 = vpack.c.b16 %v299, %v297
    %v410 = vpack.c.b16 %v302, %v300
    %v411 = vpack.c.b16 %v303, %v301
    %v412 = vpack.c.b16 %v306, %v304
    %v413 = vpack.c.b16 %v307, %v305
    %v414 = vpack.c.b16 %v310, %v308
    %v415 = vpack.c.b16 %v311, %v309
    %v416 = vpack.c.b16 %v314, %v312
    %v417 = vpack.c.b16 %v315, %v313
    %v418 = vpack.c.b16 %v318, %v316
    %v419 = vpack.c.b16 %v319, %v317
    %v420 = vpack.c.b16 %v322, %v320
    %v421 = vpack.c.b16 %v323, %v321
    %v422 = vpack.c.b16 %v326, %v324
    %v423 = vpack.c.b16 %v327, %v325
    %v424 = vpack.c.b16 %v330, %v328
    %v425 = vpack.c.b16 %v331, %v329
    %v426 = vpack.c.b16 %v334, %v332
    %v427 = vpack.c.b16 %v335, %v333
    %v428 = vpack.c.b16 %v338, %v336
    %v429 = vpack.c.b16 %v339, %v337
    %v430 = vpack.c.b16 %v342, %v340
    %v431 = vpack.c.b16 %v343, %v341
    %v432 = vpack.c.b16 %v346, %v344
    %v433 = vpack.c.b16 %v347, %v345
    %v434 = vpack.c.b16 %v350, %v348
    %v435 = vpack.c.b16 %v351, %v349
    %v436 = vpack.c.b16 %v354, %v352
    %v437 = vpack.c.b16 %v355, %v353
    %v438 = vpack.c.b16 %v358, %v356
    %v439 = vpack.c.b16 %v359, %v357
    %v440 = vpack.c.b16 %v362, %v360
    %v441 = vpack.c.b16 %v363, %v361
    %v442 = vpack.c.b16 %v366, %v364
    %v443 = vpack.c.b16 %v367, %v365
    %v444 = vpack.c.b16 %v370, %v368
    %v445 = vpack.c.b16 %v371, %v369
    %v446 = vpack.c.b16 %v374, %v372
    %v447 = vpack.c.b16 %v375, %v373
    %v448 = vpack.c.b16 %v378, %v376
    %v449 = vpack.c.b16 %v379, %v377
    %v450 = vpack.c.b16 %v382, %v380
    %v451 = vpack.c.b16 %v383, %v381
    %v452 = vpack.c.b16 %v386, %v384
    %v453 = vpack.c.b16 %v387, %v385
    %v454 = vpack.c.b16 %v390, %v388
    %v455 = vpack.c.b16 %v391, %v389
    %520 = vmatprep.subr.bf16.mxu0 %v407
    %521 = vmatpush1.bf16.msra.mxu0 %v406
    %522 = vmatprep.subr.bf16.mxu0 %v405
    %523 = vmatpush1.bf16.msra.mxu0 %v404
    %524 = vmatprep.subr.bf16.mxu0 %v403
    %525 = vmatpush1.bf16.msra.mxu0 %v402
    %526 = vmatprep.subr.bf16.mxu0 %v401
    %527 = vmatpush1.bf16.msra.mxu0 %v400
    %528 = vmatprep.subr.bf16.mxu0 %v399
    %529 = vmatpush1.bf16.msra.mxu0 %v398
    %530 = vmatprep.subr.bf16.mxu0 %v397
    %531 = vmatpush1.bf16.msra.mxu0 %v396
    %532 = vmatprep.subr.bf16.mxu0 %v395
    %533 = vmatpush1.bf16.msra.mxu0 %v394
    %534 = vmatprep.subr.bf16.mxu0 %v393
    %535 = vmatpush1.bf16.msra.mxu0 %v392
    %536 = vmatprep.subr.bf16.mxu0 %v423
    %537 = vmatpush2.bf16.msra.mxu0 %v422
    %538 = vmatprep.subr.bf16.mxu0 %v421
    %539 = vmatpush2.bf16.msra.mxu0 %v420
    %540 = vmatprep.subr.bf16.mxu0 %v419
    %541 = vmatpush2.bf16.msra.mxu0 %v418
    %542 = vmatprep.subr.bf16.mxu0 %v417
    %543 = vmatpush2.bf16.msra.mxu0 %v416
    %544 = vmatprep.subr.bf16.mxu0 %v415
    %545 = vmatpush2.bf16.msra.mxu0 %v414
    %546 = vmatprep.subr.bf16.mxu0 %v413
    %547 = vmatpush2.bf16.msra.mxu0 %v412
    %548 = vmatprep.subr.bf16.mxu0 %v411
    %549 = vmatpush2.bf16.msra.mxu0 %v410
    %550 = vmatprep.subr.bf16.mxu0 %v409
    %551 = vmatpush2.bf16.msra.mxu0 %v408
    %552 = vmatprep.mubr.bf16.mxu0 %v193
    %553 = vmatmul.mubr.bf16.gmra.mxu0 %v192
    %v554 = vpop.f32.mrf.mxu0
    %v555 = vadd.f32 %v160, %v554
    %v556 = vpop.f32.mrf.mxu0
    %v557 = vadd.f32 %v164, %v556
    %v558 = vpop.f32.mrf.mxu0
    %v559 = vpop.f32.mrf.mxu0
    %560 = vdwg.mxu0
    %561 = vmatprep.subr.bf16.mxu0 %v439
    %562 = vmatpush1.bf16.msra.mxu0 %v438
    %563 = vmatprep.subr.bf16.mxu0 %v437
    %564 = vmatpush1.bf16.msra.mxu0 %v436
    %565 = vmatprep.subr.bf16.mxu0 %v435
    %566 = vmatpush1.bf16.msra.mxu0 %v434
    %567 = vmatprep.subr.bf16.mxu0 %v433
    %568 = vmatpush1.bf16.msra.mxu0 %v432
    %569 = vmatprep.subr.bf16.mxu0 %v431
    %570 = vmatpush1.bf16.msra.mxu0 %v430
    %571 = vmatprep.subr.bf16.mxu0 %v429
    %572 = vmatpush1.bf16.msra.mxu0 %v428
    %573 = vmatprep.subr.bf16.mxu0 %v427
    %574 = vmatpush1.bf16.msra.mxu0 %v426
    %575 = vmatprep.subr.bf16.mxu0 %v425
    %576 = vmatpush1.bf16.msra.mxu0 %v424
    %577 = vmatprep.subr.bf16.mxu0 %v455
    %578 = vmatpush2.bf16.msra.mxu0 %v454
    %579 = vmatprep.subr.bf16.mxu0 %v453
    %580 = vmatpush2.bf16.msra.mxu0 %v452
    %581 = vmatprep.subr.bf16.mxu0 %v451
    %582 = vmatpush2.bf16.msra.mxu0 %v450
    %583 = vmatprep.subr.bf16.mxu0 %v449
    %584 = vmatpush2.bf16.msra.mxu0 %v448
    %585 = vmatprep.subr.bf16.mxu0 %v447
    %586 = vmatpush2.bf16.msra.mxu0 %v446
    %587 = vmatprep.subr.bf16.mxu0 %v445
    %588 = vmatpush2.bf16.msra.mxu0 %v444
    %589 = vmatprep.subr.bf16.mxu0 %v443
    %590 = vmatpush2.bf16.msra.mxu0 %v442
    %591 = vmatprep.subr.bf16.mxu0 %v441
    %592 = vmatpush2.bf16.msra.mxu0 %v440
    %593 = vmatprep.mubr.bf16.mxu0 %v195
    %594 = vmatmul.mubr.bf16.gmra.mxu0 %v194
    %v595 = vpop.f32.mrf.mxu0
    %v596 = vadd.f32 %v555, %v595
    %v597 = vpop.f32.mrf.mxu0
    %v598 = vadd.f32 %v557, %v597
    %v599 = vpop.f32.mrf.mxu0
    %v600 = vpop.f32.mrf.mxu0
    %601 = vdwg.mxu0
    %v602 = vmul.f32 %v598, 0.5
    %v603 = vmul.f32 %v602, 1.442695
    %v604 = vpow.pop %v603
    %v605 = vld [vmem:[%s3] sm:$0x3]
    %v606 = vmul.f32 %v604, %v605
    %v607 = vadd.f32 %v596, %v606
    %608 = vst [vmem:[#allocation6] sm:$0x3] %v607
    %v609 = vmul.f32 %v604, 0.5
    %v610 = vmul.f32 %v609, %v604
    %v611 = vmul.f32 %v596, 0.5
    %v612 = vmul.f32 %v611, %v596
    %v613 = vadd.f32 %v610, %v612
    %v614 = vsub.f32 %v613, %v602
    %v615 = vsub.f32 %v614, 0.5
    %vm616 = vcmask 1041408
    %v617 = vsel %vm616, %v615, 0.0
    %618 = vadd.xlane.f32.xlu0 %v617
    %v619 = vpop.xlane.xlu0 %618
    %v620 = vrot.slane %v619, 4
    %v621 = vadd.f32 %v619, %v620
    %v622 = vrot.slane %v621, 2
    %v623 = vadd.f32 %v621, %v622
    %v624 = vrot.slane %v623, 1
    %v625 = vadd.f32 %v623, %v624
    %s626 = vtos %v625
    %s627 = scalar_lea.smem [#allocation7], 0
    %628 = sst [smem:[%s627]] %s626
    // Predicated region
    $region22: #{tpu_custom_call.1} parent=1 // pred_check
      _
    $region23: #{tpu_custom_call.1} parent=1 // pred_check_branch
      %630 = sbr.rel (0) target = $region25
    $region24: #{tpu_custom_call.1} parent=1 // pred_region
      %s632 = ssub.s32 32, 32
      %633 = vsyncadd [#allocation4], %s632
      %s635 = sshll.u32 [#allocation6], 4
      %s636 = int_to_ptr.vmem [resolvable:$true] %s635
      %638 = dma.vmem_to_hbm [thread:$0]  %s636, 32, %s4, [#allocation4]
    $region25: #{tpu_custom_call.1} parent=1 // pred_fallthru
      _
    // Predicated region
    $region26: #{tpu_custom_call.1} parent=1 // pred_check
      _
    $region27: #{tpu_custom_call.1} parent=1 // pred_check_branch
      %640 = sbr.rel (0) target = $region29
    $region28: #{tpu_custom_call.1} parent=1 // pred_region
      %s642 = ssub.s32 16, 16
      %643 = vsyncadd [#allocation5], %s642
      %646 = dma.smem_to_hbm [#allocation7], 16, %s5, [#allocation5]
    $region29: #{tpu_custom_call.1} parent=1 // pred_fallthru
      _
    // Predicated region
    $region30: #{tpu_custom_call.1} parent=1 // pred_check
      _
    $region31: #{tpu_custom_call.1} parent=1 // pred_check_branch
      %648 = sbr.rel (0) target = $region33
    $region32: #{tpu_custom_call.1} parent=1 // pred_region
      %649 = dma.done [#allocation4], 32
    $region33: #{tpu_custom_call.1} parent=1 // pred_fallthru
      _
    // Predicated region
    $region34: #{tpu_custom_call.1} parent=1 // pred_check
      _
    $region35: #{tpu_custom_call.1} parent=1 // pred_check_branch
      %651 = sbr.rel (0) target = $region37
    $region36: #{tpu_custom_call.1} parent=1 // pred_region
      %652 = dma.done [#allocation5], 16
    $region37: #{tpu_custom_call.1} parent=1 // pred_fallthru
      _
    %653 = sfence
    %654 = vsyncpa [#allocation3], 1
    %655 = vsyncpa [#allocation4], 1
    %656 = vsyncpa [#allocation5], 1

</llo_original>
